<compile_context>
chip_gen: v5e
topology: v5e:2x2
jax: 0.10.0
libtpu: 0.0.40
codegen_flags: <defaults>
</compile_context>

<pallas_src>
import math

import jax
import jax.numpy as jnp
from jax.experimental import pallas as pl
from jax.experimental.pallas import tpu as pltpu


def boom_kernel(x_ref, w1_ref, b1_ref, w2_ref, b2_ref, o_ref):
    # x_ref: (TM, in_p)   w1_ref: (in_p, hid_p)   b1_ref: (1, hid_p)
    # w2_ref: (hid_p, out_p)  b2_ref: (1, out_p)  o_ref: (TM, out_p)
    x = x_ref[...]
    h = jnp.dot(x, w1_ref[...], preferred_element_type=jnp.float32)
    h = h + b1_ref[...].astype(jnp.float32)
    # GELU as in the reference module: x * sigmoid(1.702 * x)  (f32 on accumulator)
    h = h * jax.nn.sigmoid(1.702 * h)
    o = jnp.dot(h.astype(w2_ref.dtype), w2_ref[...],
                preferred_element_type=jnp.float32)
    o = o + b2_ref[...].astype(jnp.float32)
    o_ref[...] = o.astype(o_ref.dtype)


def _round_up(x, m):
    return (x + m - 1) // m * m


def _pad2(a, rows, cols):
    pr, pc = rows - a.shape[0], cols - a.shape[1]
    if pr or pc:
        a = jnp.pad(a, ((0, pr), (0, pc)))
    return a


def boom_forward(vec, w1, b1, w2, b2, *, tm=256):
    """vec: (seq, batch, in_dim) -> (seq, batch, out_dim).

    w1: (in_dim, hidden), b1: (1, hidden), w2: (hidden, out_dim), b2: (1, out_dim)
    (weights stored pre-transposed relative to torch's (out, in) convention).
    """
    S, B, in_dim = vec.shape
    hidden = w1.shape[1]
    out_dim = w2.shape[1]
    dtype = vec.dtype
    itemsize = jnp.dtype(dtype).itemsize

    # ---- pad feature dims to lane-dense multiples of 128 ----
    in_p = _round_up(in_dim, 128)
    hid_p = _round_up(hidden, 128)
    out_p = _round_up(out_dim, 128)

    # ---- flatten rows and pick the M tile ----
    M = S * B
    Mp = _round_up(M, 8)
    TM = tm if Mp >= tm else Mp          # small problems: single tile
    Mp = _round_up(M, TM)

    x = vec.reshape(M, in_dim)
    x = _pad2(x, Mp, in_p)
    w1p = _pad2(w1.astype(dtype), in_p, hid_p)
    b1p = _pad2(b1.astype(dtype), 1, hid_p)
    w2p = _pad2(w2.astype(dtype), hid_p, out_p)
    b2p = _pad2(b2.astype(dtype), 1, out_p)

    grid = (Mp // TM,)

    # ---- VMEM budget: resident weights (x2 for buffering slack) +
    #      double-buffered activation tiles + f32 intermediates ----
    w_bytes = (in_p * hid_p + hid_p * out_p + hid_p + out_p) * itemsize
    act_bytes = 2 * TM * (in_p + out_p) * itemsize
    f32_bytes = TM * (hid_p + out_p) * 4
    need = 2 * w_bytes + act_bytes + f32_bytes
    vmem_limit = min(64 * 1024 * 1024, max(32 * 1024 * 1024, int(1.5 * need)))

    cost = pl.CostEstimate(
        flops=2 * Mp * in_p * hid_p + 2 * Mp * hid_p * out_p,
        transcendentals=Mp * hid_p,
        bytes_accessed=(Mp * in_p + Mp * out_p) * itemsize + w_bytes,
    )

    out = pl.pallas_call(
        boom_kernel,
        out_shape=jax.ShapeDtypeStruct((Mp, out_p), dtype),
        grid=grid,
        in_specs=[
            pl.BlockSpec((TM, in_p), lambda i: (i, 0)),      # streaming activations
            pl.BlockSpec((in_p, hid_p), lambda i: (0, 0)),   # resident weights
            pl.BlockSpec((1, hid_p), lambda i: (0, 0)),
            pl.BlockSpec((hid_p, out_p), lambda i: (0, 0)),
            pl.BlockSpec((1, out_p), lambda i: (0, 0)),
        ],
        out_specs=pl.BlockSpec((TM, out_p), lambda i: (i, 0)),
        compiler_params=pltpu.CompilerParams(
            dimension_semantics=("parallel",),
            vmem_limit_bytes=vmem_limit,
        ),
        cost_estimate=cost,
    )(x, w1p, b1p, w2p, b2p)

    return out[:M, :out_dim].reshape(S, B, out_dim)


def init_boom_params(key, in_dim, hidden_dim=-1, out_dim=-1, dtype=jnp.float32):
    """Deterministic nn.Linear-style init (uniform(-1/sqrt(fan_in), 1/sqrt(fan_in)))."""
    if hidden_dim == -1:
        hidden_dim = 2 * in_dim
    if out_dim == -1:
        out_dim = in_dim
    k1, k2, k3, k4 = jax.random.split(key, 4)
    bound1 = 1.0 / math.sqrt(in_dim)
    bound2 = 1.0 / math.sqrt(hidden_dim)
    w1 = jax.random.uniform(k1, (in_dim, hidden_dim), dtype, -bound1, bound1)
    b1 = jax.random.uniform(k2, (1, hidden_dim), dtype, -bound1, bound1)
    w2 = jax.random.uniform(k3, (hidden_dim, out_dim), dtype, -bound2, bound2)
    b2 = jax.random.uniform(k4, (1, out_dim), dtype, -bound2, bound2)
    return w1, b1, w2, b2


def boom_reference(vec, w1, b1, w2, b2):
    h = vec @ w1 + b1[0]
    h = h * jax.nn.sigmoid(1.702 * h)
    return h @ w2 + b2[0]


if __name__ == "__main__":
    seq, batch, in_dim = 8, 2, 32
    key = jax.random.PRNGKey(0)
    k_x, k_p = jax.random.split(key)

    vec = jax.random.normal(k_x, (seq, batch, in_dim), jnp.float32)
    w1, b1, w2, b2 = init_boom_params(k_p, in_dim)  # hidden=64, out=32

    # f32 path: exact check against the pure-JAX reference.
    out = jax.block_until_ready(boom_forward(vec, w1, b1, w2, b2))
    ref = boom_reference(vec, w1, b1, w2, b2)
    assert out.shape == (seq, batch, in_dim), out.shape
    assert jnp.allclose(out, ref, atol=1e-5, rtol=1e-5), "f32 mismatch vs reference"

    # bf16 fast path (MXU-native operands, f32 accumulation): loose tolerance.
    vec_bf = vec.astype(jnp.bfloat16)
    w1b, b1b, w2b, b2b = (a.astype(jnp.bfloat16) for a in (w1, b1, w2, b2))
    out_bf = jax.block_until_ready(boom_forward(vec_bf, w1b, b1b, w2b, b2b))
    assert out_bf.shape == (seq, batch, in_dim), out_bf.shape
    assert jnp.allclose(out_bf.astype(jnp.float32), ref, atol=6e-2, rtol=6e-2), \
        "bf16 mismatch vs reference"

    print("KERNEL_OK")
</pallas_src>

<mosaic_0001>
module attributes {stable_mosaic.version = 11 : i64} {
  func.func @boom_kernel(%arg0: i32, %arg1: memref<16x128xf32, #tpu.memory_space<vmem>>, %arg2: memref<128x128xf32, #tpu.memory_space<vmem>>, %arg3: memref<1x128xf32, #tpu.memory_space<vmem>>, %arg4: memref<128x128xf32, #tpu.memory_space<vmem>>, %arg5: memref<1x128xf32, #tpu.memory_space<vmem>>, %arg6: memref<16x128xf32, #tpu.memory_space<vmem>>) attributes {dimension_semantics = [#tpu.dimension_semantics<parallel>], iteration_bounds = array<i64: 1>, scalar_prefetch = 0 : i64, scratch_operands = 0 : i64, tpu.core_type = #tpu.core_type<tc>, window_params = [{transform_indices = @transform_0, window_bounds = array<i64: 16, 128>}, {pipeline_mode = #tpu.pipeline_mode<synchronous>, transform_indices = @transform_1, window_bounds = array<i64: 128, 128>}, {pipeline_mode = #tpu.pipeline_mode<synchronous>, transform_indices = @transform_2, window_bounds = array<i64: 1, 128>}, {pipeline_mode = #tpu.pipeline_mode<synchronous>, transform_indices = @transform_3, window_bounds = array<i64: 128, 128>}, {pipeline_mode = #tpu.pipeline_mode<synchronous>, transform_indices = @transform_4, window_bounds = array<i64: 1, 128>}, {transform_indices = @transform_5, window_bounds = array<i64: 16, 128>}]} {
    %c0 = arith.constant 0 : index
    %c0_0 = arith.constant 0 : index
    %0 = vector.load %arg1[%c0, %c0_0] : memref<16x128xf32, #tpu.memory_space<vmem>>, vector<16x128xf32>
    %c0_1 = arith.constant 0 : index
    %c0_2 = arith.constant 0 : index
    %1 = vector.load %arg2[%c0_1, %c0_2] : memref<128x128xf32, #tpu.memory_space<vmem>>, vector<128x128xf32>
    %cst = arith.constant dense<0.000000e+00> : vector<16x128xf32>
    %2 = tpu.matmul %0, %1, %cst {dimension_numbers = #tpu.dot_dimension_numbers<[1], [0], [0], [1], [0, 0, 1, 1], [], []>} : vector<16x128xf32>, vector<128x128xf32>, vector<16x128xf32> -> vector<16x128xf32>
    %c0_3 = arith.constant 0 : index
    %c0_4 = arith.constant 0 : index
    %3 = vector.load %arg3[%c0_3, %c0_4] : memref<1x128xf32, #tpu.memory_space<vmem>>, vector<1x128xf32>
    %4 = vector.broadcast %3 : vector<1x128xf32> to vector<16x128xf32>
    %5 = arith.addf %2, %4 : vector<16x128xf32>
    %cst_5 = arith.constant 1.702000e+00 : f32
    %6 = vector.broadcast %cst_5 : f32 to vector<16x128xf32>
    %7 = arith.mulf %6, %5 : vector<16x128xf32>
    %8 = arith.negf %7 : vector<16x128xf32>
    %9 = math.exp %8 : vector<16x128xf32>
    %cst_6 = arith.constant 1.000000e+00 : f32
    %10 = vector.broadcast %cst_6 : f32 to vector<16x128xf32>
    %11 = arith.addf %10, %9 : vector<16x128xf32>
    %12 = arith.divf %10, %11 : vector<16x128xf32>
    %13 = arith.mulf %5, %12 : vector<16x128xf32>
    %c0_7 = arith.constant 0 : index
    %c0_8 = arith.constant 0 : index
    %14 = vector.load %arg4[%c0_7, %c0_8] : memref<128x128xf32, #tpu.memory_space<vmem>>, vector<128x128xf32>
    %cst_9 = arith.constant dense<0.000000e+00> : vector<16x128xf32>
    %15 = tpu.matmul %13, %14, %cst_9 {dimension_numbers = #tpu.dot_dimension_numbers<[1], [0], [0], [1], [0, 0, 1, 1], [], []>} : vector<16x128xf32>, vector<128x128xf32>, vector<16x128xf32> -> vector<16x128xf32>
    %c0_10 = arith.constant 0 : index
    %c0_11 = arith.constant 0 : index
    %16 = vector.load %arg5[%c0_10, %c0_11] : memref<1x128xf32, #tpu.memory_space<vmem>>, vector<1x128xf32>
    %17 = vector.broadcast %16 : vector<1x128xf32> to vector<16x128xf32>
    %18 = arith.addf %15, %17 : vector<16x128xf32>
    %c0_12 = arith.constant 0 : index
    %c0_13 = arith.constant 0 : index
    %19 = vector.load %arg6[%c0_12, %c0_13] : memref<16x128xf32, #tpu.memory_space<vmem>>, vector<16x128xf32>
    tpu.vector_store %arg6[%c0_12, %c0_13], %18 {strides = array<i32>} : memref<16x128xf32, #tpu.memory_space<vmem>>, vector<16x128xf32>,
    return
  }
  func.func @transform_0(%arg0: i32) -> (i32, i32) {
    %c0_i32 = arith.constant 0 : i32
    %c0_i32_0 = arith.constant 0 : i32
    return %arg0, %c0_i32 : i32, i32
  }
  func.func @transform_1(%arg0: i32) -> (i32, i32) {
    %c0_i32 = arith.constant 0 : i32
    %c0_i32_0 = arith.constant 0 : i32
    %c0_i32_1 = arith.constant 0 : i32
    return %c0_i32, %c0_i32_0 : i32, i32
  }
  func.func @transform_2(%arg0: i32) -> (i32, i32) {
    %c0_i32 = arith.constant 0 : i32
    %c0_i32_0 = arith.constant 0 : i32
    %c0_i32_1 = arith.constant 0 : i32
    return %c0_i32, %c0_i32_0 : i32, i32
  }
  func.func @transform_3(%arg0: i32) -> (i32, i32) {
    %c0_i32 = arith.constant 0 : i32
    %c0_i32_0 = arith.constant 0 : i32
    %c0_i32_1 = arith.constant 0 : i32
    return %c0_i32, %c0_i32_0 : i32, i32
  }
  func.func @transform_4(%arg0: i32) -> (i32, i32) {
    %c0_i32 = arith.constant 0 : i32
    %c0_i32_0 = arith.constant 0 : i32
    %c0_i32_1 = arith.constant 0 : i32
    return %c0_i32, %c0_i32_0 : i32, i32
  }
  func.func @transform_5(%arg0: i32) -> (i32, i32) {
    %c0_i32 = arith.constant 0 : i32
    %c0_i32_0 = arith.constant 0 : i32
    return %arg0, %c0_i32 : i32, i32
  }
}

</mosaic_0001>

<llo_original>
// kernel: tpu_custom_call.1
$region0: #{tpu_custom_call.1}
  #allocation0 [shape = 'u32[]', space=smem, size = 0x4, offset = 0x4, fixed_abs, tag = 'smem constant byte address 0x4 - core index']
  #allocation1 [shape = 'u32[72,128]{1,0:T(1,128)}', space=vmem, size = 0x9000, scoped, tag = 'internal scratch']
  %s0 = inlined_call_operand.hbm [shape: f32[16,128], index: 0, kind: input, shape index: {}]
  %s1 = inlined_call_operand.hbm [shape: f32[128,128], index: 1, kind: input, shape index: {}]
  %s2 = inlined_call_operand.vmem [shape: f32[1,128], index: 2, kind: input, shape index: {}]
  %s3 = inlined_call_operand.hbm [shape: f32[128,128], index: 3, kind: input, shape index: {}]
  %s4 = inlined_call_operand.vmem [shape: f32[1,128], index: 4, kind: input, shape index: {}]
  %s5 = inlined_call_operand.hbm [shape: f32[16,128], index: 5, kind: output, shape index: {}]
  %s6 = sld [smem:[#allocation0]]
  $region42: #{tpu_custom_call.1} parent=0
    _
  %s8 = ssub.s32 1, %s6
  %s9 = scalar_select 0, %s8, %s6
  $region1: #{tpu_custom_call.1} parent=0
    #allocation2 [shape = 'u8[8192]{0}', space=vmem, size = 0x2000, scoped, tag = 'input window, operand 0, single buffered']
    #allocation3 [shape = 's32[1]{0}', space=sflag, size = 0x4, scoped, tag = 'scoped memory for tpu_custom_call.1']
    #allocation4 [shape = 's32[1]{0}', space=sflag, size = 0x4, scoped, tag = 'scoped memory for tpu_custom_call.1']
    #allocation5 [shape = 'u8[65536]{0}', space=vmem, size = 0x10000, scoped, tag = 'input window, operand 1, single buffered']
    #allocation6 [shape = 's32[1]{0}', space=sflag, size = 0x4, scoped, tag = 'scoped memory for tpu_custom_call.1']
    #allocation7 [shape = 'u8[65536]{0}', space=vmem, size = 0x10000, scoped, tag = 'input window, operand 3, single buffered']
    #allocation8 [shape = 'u8[8192]{0}', space=vmem, size = 0x2000, scoped, tag = 'output window, operand 0, single buffered']
    %10 = vsyncpa [#allocation3], 0
    %11 = vsyncpa [#allocation6], 0
    %12 = vsyncpa [#allocation4], 0
    // Predicated region
    $region2: #{tpu_custom_call.1} parent=1 // pred_check
      _
    $region3: #{tpu_custom_call.1} parent=1 // pred_check_branch
      %14 = sbr.rel (0) target = $region5
    $region4: #{tpu_custom_call.1} parent=1 // pred_region
      %16 = vsyncadd [#allocation3], 0
      %s17 = sshll.u32 %s0, 4
      %s18 = int_to_ptr.hbm [resolvable:$true] %s17
      %s19 = sshll.u32 [#allocation2], 4
      %s20 = int_to_ptr.vmem [resolvable:$true] %s19
      %25 = dma.hbm_to_vmem [thread:$0]  %s18, 256, %s20, [#allocation3], 128, 128, 8
    $region5: #{tpu_custom_call.1} parent=1 // pred_fallthru
      _
    // Predicated region
    $region6: #{tpu_custom_call.1} parent=1 // pred_check
      _
    $region7: #{tpu_custom_call.1} parent=1 // pred_check_branch
      %27 = sbr.rel (0) target = $region9
    $region8: #{tpu_custom_call.1} parent=1 // pred_region
      %29 = vsyncadd [#allocation6], 0
      %s30 = sshll.u32 %s1, 4
      %s31 = int_to_ptr.hbm [resolvable:$true] %s30
      %s32 = sshll.u32 [#allocation5], 4
      %s33 = int_to_ptr.vmem [resolvable:$true] %s32
      %38 = dma.hbm_to_vmem [thread:$0]  %s31, 2048, %s33, [#allocation6], 128, 128, 8
    $region9: #{tpu_custom_call.1} parent=1 // pred_fallthru
      _
    // Predicated region
    $region10: #{tpu_custom_call.1} parent=1 // pred_check
      _
    $region11: #{tpu_custom_call.1} parent=1 // pred_check_branch
      %40 = sbr.rel (0) target = $region13
    $region12: #{tpu_custom_call.1} parent=1 // pred_region
      _
    $region13: #{tpu_custom_call.1} parent=1 // pred_fallthru
      _
    // Predicated region
    $region14: #{tpu_custom_call.1} parent=1 // pred_check
      _
    $region15: #{tpu_custom_call.1} parent=1 // pred_check_branch
      %42 = sbr.rel (0) target = $region17
    $region16: #{tpu_custom_call.1} parent=1 // pred_region
      %44 = vsyncadd [#allocation6], 0
      %s45 = sshll.u32 %s3, 4
      %s46 = int_to_ptr.hbm [resolvable:$true] %s45
      %s47 = sshll.u32 [#allocation7], 4
      %s48 = int_to_ptr.vmem [resolvable:$true] %s47
      %53 = dma.hbm_to_vmem [thread:$0]  %s46, 2048, %s48, [#allocation6], 128, 128, 8
    $region17: #{tpu_custom_call.1} parent=1 // pred_fallthru
      _
    // Predicated region
    $region18: #{tpu_custom_call.1} parent=1 // pred_check
      _
    $region19: #{tpu_custom_call.1} parent=1 // pred_check_branch
      %55 = sbr.rel (0) target = $region21
    $region20: #{tpu_custom_call.1} parent=1 // pred_region
      _
    $region21: #{tpu_custom_call.1} parent=1 // pred_fallthru
      _
    // Predicated region
    $region22: #{tpu_custom_call.1} parent=1 // pred_check
      _
    $region23: #{tpu_custom_call.1} parent=1 // pred_check_branch
      %57 = sbr.rel (0) target = $region25
    $region24: #{tpu_custom_call.1} parent=1 // pred_region
      %59 = dma.done [#allocation3], 256
    $region25: #{tpu_custom_call.1} parent=1 // pred_fallthru
      _
    // Predicated region
    $region26: #{tpu_custom_call.1} parent=1 // pred_check
      _
    $region27: #{tpu_custom_call.1} parent=1 // pred_check_branch
      %61 = sbr.rel (0) target = $region29
    $region28: #{tpu_custom_call.1} parent=1 // pred_region
      %63 = dma.done [#allocation6], 2048
    $region29: #{tpu_custom_call.1} parent=1 // pred_fallthru
      _
    // Predicated region
    $region30: #{tpu_custom_call.1} parent=1 // pred_check
      _
    $region31: #{tpu_custom_call.1} parent=1 // pred_check_branch
      %65 = sbr.rel (0) target = $region33
    $region32: #{tpu_custom_call.1} parent=1 // pred_region
      %67 = dma.done [#allocation6], 2048
    $region33: #{tpu_custom_call.1} parent=1 // pred_fallthru
      _
    %v68 = vld [vmem:[#allocation2] sm:$0xff]
    %v69 = vld [vmem:[#allocation2 + $0x8] sm:$0xff]
    %v70 = vld [vmem:[#allocation5] sm:$0xff]
    %v71 = vld [vmem:[#allocation5 + $0x8] sm:$0xff]
    %v72 = vld [vmem:[#allocation5 + $0x10] sm:$0xff]
    %v73 = vld [vmem:[#allocation5 + $0x18] sm:$0xff]
    %v74 = vld [vmem:[#allocation5 + $0x20] sm:$0xff]
    %v75 = vld [vmem:[#allocation5 + $0x28] sm:$0xff]
    %v76 = vld [vmem:[#allocation5 + $0x30] sm:$0xff]
    %v77 = vld [vmem:[#allocation5 + $0x38] sm:$0xff]
    %v78 = vld [vmem:[#allocation5 + $0x40] sm:$0xff]
    %v79 = vld [vmem:[#allocation5 + $0x48] sm:$0xff]
    %v80 = vld [vmem:[#allocation5 + $0x50] sm:$0xff]
    %v81 = vld [vmem:[#allocation5 + $0x58] sm:$0xff]
    %v82 = vld [vmem:[#allocation5 + $0x60] sm:$0xff]
    %v83 = vld [vmem:[#allocation5 + $0x68] sm:$0xff]
    %v84 = vld [vmem:[#allocation5 + $0x70] sm:$0xff]
    %v85 = vld [vmem:[#allocation5 + $0x78] sm:$0xff]
    %v86 = vld [vmem:[%s2] sm:$0x1]
    %v88 = vperm.slane %v86, 0
    %90 = vmatpush.msra.mxu0 %v85
    %91 = vmatpush.msra.mxu0 %v84
    %92 = vmatpush.msra.mxu0 %v83
    %93 = vmatpush.msra.mxu0 %v82
    %94 = vmatpush.msra.mxu0 %v81
    %95 = vmatpush.msra.mxu0 %v80
    %96 = vmatpush.msra.mxu0 %v79
    %97 = vmatpush.msra.mxu0 %v78
    %98 = vmatpush.msra.mxu0 %v77
    %99 = vmatpush.msra.mxu0 %v76
    %100 = vmatpush.msra.mxu0 %v75
    %101 = vmatpush.msra.mxu0 %v74
    %102 = vmatpush.msra.mxu0 %v73
    %103 = vmatpush.msra.mxu0 %v72
    %104 = vmatpush.msra.mxu0 %v71
    %105 = vmatpush.msra.mxu0 %v70
    %106 = vmatmul.f32.gmra.mxu0 %v68
    %v107 = vpop.f32.mrf.mxu0
    %v108 = vadd.f32 %v88, %v107
    %109 = vmatmul.f32.gmra.mxu0 %v69
    %v110 = vpop.f32.mrf.mxu0
    %v111 = vadd.f32 %v88, %v110
    %112 = vdwg.mxu0
    %v113 = vmul.f32 %v108, 1.702
    %v114 = vmul.f32 %v111, 1.702
    %v115 = vxor.u32 %v113, 2147483648
    %v116 = vxor.u32 %v114, 2147483648
    %v117 = vmul.f32 %v115, 1.442695
    %v118 = vpow.pop %v117
    %v119 = vmul.f32 %v116, 1.442695
    %v120 = vpow.pop %v119
    %v121 = vadd.f32 %v118, 1.0
    %v122 = vadd.f32 %v120, 1.0
    %v123 = vrcp.pop %v121
    %v124 = vmul.f32 %v121, %v123
    %v125 = vsub.f32 1.0, %v124
    %v126 = vmul.f32 %v123, %v125
    %v127 = vadd.f32 %v123, %v126
    %vm128 = vweird.f32 %v121
    %vm129 = vweird.f32 %v123
    %vm130 = vmor %vm128, %vm129
    %v131 = vsel %vm130, %v123, %v127
    %v132 = vand.u32 2147483647, %v121
    %vm133 = vcmp.eq.f32.partialorder %v132, 8.507059e+37
    %v134 = vand.u32 %v121, 2147483648
    %v135 = vor.u32 1.1754944e-38, %v134
    %v136 = vsel %vm133, %v135, %v131
    %v137 = vmul.f32 1.0, %v136
    %v138 = vrcp.pop %v122
    %v139 = vmul.f32 %v122, %v138
    %v140 = vsub.f32 1.0, %v139
    %v141 = vmul.f32 %v138, %v140
    %v142 = vadd.f32 %v138, %v141
    %vm143 = vweird.f32 %v122
    %vm144 = vweird.f32 %v138
    %vm145 = vmor %vm143, %vm144
    %v146 = vsel %vm145, %v138, %v142
    %v147 = vand.u32 2147483647, %v122
    %vm148 = vcmp.eq.f32.partialorder %v147, 8.507059e+37
    %v149 = vand.u32 %v122, 2147483648
    %v150 = vor.u32 1.1754944e-38, %v149
    %v151 = vsel %vm148, %v150, %v146
    %v152 = vmul.f32 1.0, %v151
    %v153 = vmul.f32 %v108, %v137
    %v154 = vmul.f32 %v111, %v152
    %v155 = vld [vmem:[#allocation7] sm:$0xff]
    %v156 = vld [vmem:[#allocation7 + $0x8] sm:$0xff]
    %v157 = vld [vmem:[#allocation7 + $0x10] sm:$0xff]
    %v158 = vld [vmem:[#allocation7 + $0x18] sm:$0xff]
    %v159 = vld [vmem:[#allocation7 + $0x20] sm:$0xff]
    %v160 = vld [vmem:[#allocation7 + $0x28] sm:$0xff]
    %v161 = vld [vmem:[#allocation7 + $0x30] sm:$0xff]
    %v162 = vld [vmem:[#allocation7 + $0x38] sm:$0xff]
    %v163 = vld [vmem:[#allocation7 + $0x40] sm:$0xff]
    %v164 = vld [vmem:[#allocation7 + $0x48] sm:$0xff]
    %v165 = vld [vmem:[#allocation7 + $0x50] sm:$0xff]
    %v166 = vld [vmem:[#allocation7 + $0x58] sm:$0xff]
    %v167 = vld [vmem:[#allocation7 + $0x60] sm:$0xff]
    %v168 = vld [vmem:[#allocation7 + $0x68] sm:$0xff]
    %v169 = vld [vmem:[#allocation7 + $0x70] sm:$0xff]
    %v170 = vld [vmem:[#allocation7 + $0x78] sm:$0xff]
    %v171 = vld [vmem:[%s4] sm:$0x1]
    %v173 = vperm.slane %v171, 0
    %175 = vmatpush.msra.mxu0 %v170
    %176 = vmatpush.msra.mxu0 %v169
    %177 = vmatpush.msra.mxu0 %v168
    %178 = vmatpush.msra.mxu0 %v167
    %179 = vmatpush.msra.mxu0 %v166
    %180 = vmatpush.msra.mxu0 %v165
    %181 = vmatpush.msra.mxu0 %v164
    %182 = vmatpush.msra.mxu0 %v163
    %183 = vmatpush.msra.mxu0 %v162
    %184 = vmatpush.msra.mxu0 %v161
    %185 = vmatpush.msra.mxu0 %v160
    %186 = vmatpush.msra.mxu0 %v159
    %187 = vmatpush.msra.mxu0 %v158
    %188 = vmatpush.msra.mxu0 %v157
    %189 = vmatpush.msra.mxu0 %v156
    %190 = vmatpush.msra.mxu0 %v155
    %191 = vmatmul.f32.gmra.mxu0 %v153
    %v192 = vpop.f32.mrf.mxu0
    %v193 = vadd.f32 %v173, %v192
    %194 = vmatmul.f32.gmra.mxu0 %v154
    %v195 = vpop.f32.mrf.mxu0
    %v196 = vadd.f32 %v173, %v195
    %197 = vdwg.mxu0
    %198 = vst [vmem:[#allocation8] sm:$0xff] %v193
    %199 = vst [vmem:[#allocation8 + $0x8] sm:$0xff] %v196
    // Predicated region
    $region34: #{tpu_custom_call.1} parent=1 // pred_check
      _
    $region35: #{tpu_custom_call.1} parent=1 // pred_check_branch
      %201 = sbr.rel (0) target = $region37
    $region36: #{tpu_custom_call.1} parent=1 // pred_region
      %203 = vsyncadd [#allocation4], 0
      %s204 = sshll.u32 [#allocation8], 4
      %s205 = int_to_ptr.vmem [resolvable:$true] %s204
      %s206 = sshll.u32 %s5, 4
      %s207 = int_to_ptr.hbm [resolvable:$true] %s206
      %212 = dma.vmem_to_hbm [thread:$0]  %s205, 256, %s207, [#allocation4], 128, 128, 8
    $region37: #{tpu_custom_call.1} parent=1 // pred_fallthru
      _
    // Predicated region
    $region38: #{tpu_custom_call.1} parent=1 // pred_check
      _
    $region39: #{tpu_custom_call.1} parent=1 // pred_check_branch
      %214 = sbr.rel (0) target = $region41
    $region40: #{tpu_custom_call.1} parent=1 // pred_region
      %216 = dma.done [#allocation4], 256
    $region41: #{tpu_custom_call.1} parent=1 // pred_fallthru
      _
    %217 = vsyncpa [#allocation3], 1
    %218 = vsyncpa [#allocation6], 1
    %219 = vsyncpa [#allocation4], 1

</llo_original>
